<compile_context>
chip_gen: v7x
topology: tpu7x:2x2x1
jax: 0.10.0
libtpu: 0.0.40
codegen_flags: <defaults>
</compile_context>

<pallas_src>
import functools
import math

import jax
import jax.numpy as jnp
from jax.experimental import pallas as pl
from jax.experimental.pallas import tpu as pltpu


def _round_up(v, m):
    return ((v + m - 1) // m) * m


def _cdiv(a, b):
    return -(-a // b)


def _rnn_unet_kernel(slab_ref, t_ref, w0xe_ref, w0t_ref, w1_ref, wgru_ref,
                     wout_ref, b_ref, out_ref, *,
                     X, Z, H, half, K0, off_z, off_xn, Xp, Zp, t_is_scalar):
    """Transposed (features, batch) fused forward pass for one batch tile."""
    f32 = jnp.float32

    # ---- merged bias column: [b0 | b1 | b_r | b_u | b_in | b_hn | b_out] ----
    b = b_ref[...]                                   # (NB, 1)
    b0 = b[0:H]
    b1 = b[H:2 * H]
    b_r = b[2 * H:2 * H + Z]
    b_u = b[2 * H + Z:2 * H + 2 * Z]
    b_in = b[2 * H + 2 * Z:2 * H + 3 * Z]
    b_hn = b[2 * H + 3 * Z:2 * H + 4 * Z]
    b_out = b[2 * H + 4 * Z:2 * H + 4 * Z + X]

    # ---- sinusoidal time embedding (EUP exp/sin/cos; otherwise idle) --------
    k = jax.lax.broadcasted_iota(jnp.int32, (half, 1), 0).astype(f32)
    freqs = jnp.exp(k * (-math.log(10000.0) / max(half - 1, 1)))   # (half, 1)
    if t_is_scalar:
        t_val = t_ref[0, 0]          # scalar from SMEM: no (B,1) HBM stream
        args = freqs * t_val         # (half, 1)
    else:
        args = freqs * t_ref[...]    # (half,1)*(1,TB) -> (half, TB)
    emb = jnp.concatenate([jnp.sin(args), jnp.cos(args)], axis=0)  # (H, 1|TB)
    # (H,H) @ (H,1|TB); in the scalar case this is one tiny matrix-vector push
    # whose (H,1) result broadcast-adds into pre0.
    t_contrib = jnp.dot(w0t_ref[...], emb, preferred_element_type=f32)

    # ---- input slab views (sublane-aligned static slices: free) -------------
    xe = slab_ref[0:K0, :]                # (K0, TB)  [x | ext], padded cols
    z = slab_ref[off_z:off_z + Z, :]      # (Z, TB)
    xn = slab_ref[off_xn:off_xn + X, :]   # (X, TB)

    # ---- TransitionMlp trunk: 2 x (Linear + SiLU) ----------------------------
    pre0 = (jnp.dot(w0xe_ref[...], xe, preferred_element_type=f32)
            + t_contrib + b0)
    h = jax.nn.silu(pre0)
    h = jax.nn.silu(jnp.dot(w1_ref[...], h, preferred_element_type=f32) + b1)

    # ---- GRU cell (PyTorch GRUCell semantics), hidden = z_cond --------------
    # Single fused matmul: rows of wgru = [r | u | n_i | n_h], cols = [h | z].
    hz = jnp.concatenate([h, z], axis=0)                       # (H+Z, TB)
    g = jnp.dot(wgru_ref[...], hz, preferred_element_type=f32)  # (4Z, TB)
    r = jax.nn.sigmoid(g[0:Z] + b_r)
    u = jax.nn.sigmoid(g[Z:2 * Z] + b_u)
    n = jnp.tanh(g[2 * Z:3 * Z] + b_in + r * (g[3 * Z:4 * Z] + b_hn))
    z_next = (1.0 - u) * n + u * z

    # ---- x_from_z = nn.Linear(Z, X) ------------------------------------------
    pred_x = jnp.dot(wout_ref[...], z_next, preferred_element_type=f32) + b_out

    # ---- F.mse_loss(pred_x, x_next, reduction='none') ------------------------
    diff = pred_x - xn

    # ---- single merged output slab (lane-dense stores: TB % 128 == 0) --------
    out_ref[0:X, :] = pred_x
    out_ref[Xp:Xp + Z, :] = z_next
    out_ref[Xp + Zp:Xp + Zp + X, :] = diff * diff


class RNNUNetPallas:
    """JAX/Pallas port of RNNUNet for len(x_shape) == 1 (TransitionMlp branch)."""

    def __init__(self, x_shape, z_shape, external_cond_dim, cfg, key):
        assert len(x_shape) == 1, "only the 1-D (MLP) branch is implemented"
        self.X = x_shape[0]
        self.Z = z_shape[0]
        self.E = external_cond_dim
        self.H = cfg["network_size"]
        assert self.H % 2 == 0
        assert cfg["num_mlp_layers"] == 2, "kernel is unrolled for 2 MLP layers"
        assert cfg["num_gru_layers"] == 1
        # The 1-D branch of the reference hard-codes self_condition=False.
        self.self_condition = False

        X, Z, H, E = self.X, self.Z, self.H, self.E
        half = H // 2

        # Sublane-aligned segment layout (features on the sublane axis).
        self.Xp = _round_up(X, 8)
        self.Zp = _round_up(Z, 8)
        self.Ep = _round_up(E, 8) if E > 0 else 0
        self.K0 = self.Xp + self.Ep          # [x | ext] contraction width
        self.off_z = self.K0
        self.off_xn = self.K0 + self.Zp
        self.in_rows = self.K0 + self.Zp + self.Xp
        self.out_rows = self.Xp + self.Zp + self.Xp

        d_in = X + H + E                     # fan-in of the trunk's first Linear
        ks = jax.random.split(key, 10)

        def unif(k, shape, fan_in):
            bound = 1.0 / math.sqrt(float(fan_in))
            return jax.random.uniform(k, shape, jnp.float32, -bound, bound)

        # Layer 0: conceptual (H, X+H+E) weight over concat([x, emb, ext]),
        # split into [x|ext] columns (zero-padded to sublane-aligned offsets)
        # and a separate time-embedding block ([sin | cos] column order).
        w0 = unif(ks[0], (H, d_in), d_in)
        b0 = unif(ks[1], (H, 1), d_in)
        w0xe = jnp.zeros((H, self.K0), jnp.float32)
        w0xe = w0xe.at[:, 0:X].set(w0[:, 0:X])
        if E > 0:
            w0xe = w0xe.at[:, self.Xp:self.Xp + E].set(w0[:, X + H:X + H + E])
        w0t = w0[:, X:X + H]                 # (H, H): [:, :half] sin, [:, half:] cos

        w1 = unif(ks[2], (H, H), H)
        b1 = unif(ks[3], (H, 1), H)

        # GRU cell, fused (4Z, H+Z): rows [r | u | n_i | n_h], cols [h | z].
        gwi = unif(ks[4], (3 * Z, H), Z)     # input-side  (weight_ih), rows [r|u|n]
        gwh = unif(ks[5], (3 * Z, Z), Z)     # hidden-side (weight_hh), rows [r|u|n]
        wgru = jnp.zeros((4 * Z, H + Z), jnp.float32)
        wgru = wgru.at[0:2 * Z, 0:H].set(gwi[0:2 * Z])          # r,u input-side
        wgru = wgru.at[0:2 * Z, H:H + Z].set(gwh[0:2 * Z])      # r,u hidden-side
        wgru = wgru.at[2 * Z:3 * Z, 0:H].set(gwi[2 * Z:3 * Z])  # n input-side
        wgru = wgru.at[3 * Z:4 * Z, H:H + Z].set(gwh[2 * Z:3 * Z])  # n hidden-side
        b_ir, b_hr, b_iz, b_hz, b_inn, b_hn = (
            unif(k, (Z, 1), Z) for k in jax.random.split(ks[6], 6))

        # x_from_z = nn.Linear(Z, X)
        wout = unif(ks[7], (X, Z), Z)
        bout = unif(ks[8], (X, 1), Z)

        # Merged bias column; r/u biases pre-summed (legal), b_in/b_hn stay
        # separate because b_hn sits inside r * (...).
        self.bias = jnp.concatenate(
            [b0, b1, b_ir + b_hr, b_iz + b_hz, b_inn, b_hn, bout], axis=0)

        # Weights stay float32: total footprint < 50 KB, so bf16 saves nothing
        # and would only add VPU casts (and v5e has no bf16 VPU).
        self.w0xe, self.w0t, self.w1 = w0xe, w0t, w1
        self.wgru, self.wout = wgru, wout

    def forward(self, x, t, z_cond, x_next, external_cond=None,
                batch_tile=None):
        f32 = jnp.float32
        X, Z = self.X, self.Z
        B = x.shape[0]

        x = jnp.asarray(x, f32)
        z_cond = jnp.asarray(z_cond, f32)
        has_x_next = x_next is not None
        x_next_arr = (jnp.asarray(x_next, f32) if has_x_next
                      else jnp.zeros((B, X), f32))

        # ---- batch tiling: lanes = batch, always a multiple of 128 -----------
        if batch_tile is None:
            batch_tile = 512
        if B > 128:
            target_steps = max(2, _cdiv(B, batch_tile))  # >=2 steps: v7x megacore
        else:
            target_steps = 1                              # tiny B: single tile
        TB = _round_up(_cdiv(B, target_steps), 128)
        n_steps = _cdiv(B, TB)
        Bp = n_steps * TB
        pad = Bp - B

        # ---- build the feature-major input slab [x | ext | z | x_next] -------
        def seg(a, rows):
            a_t = a.T                                     # (feat, B)
            return jnp.pad(a_t, ((0, rows - a_t.shape[0]), (0, pad)))

        parts = [seg(x, self.Xp)]
        if self.E > 0:
            ext = jnp.asarray(external_cond, f32)
            parts.append(seg(ext, self.Ep))
        parts.append(seg(z_cond, self.Zp))
        parts.append(seg(x_next_arr, self.Xp))
        slab = jnp.concatenate(parts, axis=0)             # (in_rows, Bp)

        # ---- timestep: scalar -> SMEM fast path; array -> (1, Bp) lane row ---
        t_is_scalar = jnp.ndim(t) == 0
        if t_is_scalar:
            t_op = jnp.full((1, 1), t, f32)
            t_spec = pl.BlockSpec(memory_space=pltpu.MemorySpace.SMEM)
        else:
            t_row = jnp.asarray(t, f32).reshape(1, B)
            t_op = jnp.pad(t_row, ((0, 0), (0, pad)))
            t_spec = pl.BlockSpec((1, TB), lambda i: (0, i))

        weights = (self.w0xe, self.w0t, self.w1, self.wgru, self.wout,
                   self.bias)

        def w_spec(w):
            # Constant index map: weights DMA'd once, kept VMEM-resident.
            return pl.BlockSpec(w.shape, lambda i: (0, 0))

        kernel = functools.partial(
            _rnn_unet_kernel,
            X=X, Z=Z, H=self.H, half=self.H // 2,
            K0=self.K0, off_z=self.off_z, off_xn=self.off_xn,
            Xp=self.Xp, Zp=self.Zp, t_is_scalar=t_is_scalar)

        out = pl.pallas_call(
            kernel,
            out_shape=jax.ShapeDtypeStruct((self.out_rows, Bp), f32),
            grid=(n_steps,),
            in_specs=([pl.BlockSpec((self.in_rows, TB), lambda i: (0, i)),
                       t_spec]
                      + [w_spec(w) for w in weights]),
            out_specs=pl.BlockSpec((self.out_rows, TB), lambda i: (0, i)),
            compiler_params=pltpu.CompilerParams(
                dimension_semantics=("parallel",)),
        )(slab, t_op, *weights)

        pred_x = out[0:X, 0:B].T
        pred_z = out[self.Xp:self.Xp + Z, 0:B].T
        loss = (out[self.Xp + self.Zp:self.Xp + self.Zp + X, 0:B].T
                if has_x_next else None)
        return pred_x, pred_z, loss


def _ref_forward(model, x, t_per_batch, z, x_next, ext):
    """Pure-JAX reference (batch-major), same weights, no Pallas."""
    X, Z, H = model.X, model.Z, model.H
    half = H // 2
    bias = model.bias[:, 0]
    b0 = bias[0:H]
    b1 = bias[H:2 * H]
    b_r = bias[2 * H:2 * H + Z]
    b_u = bias[2 * H + Z:2 * H + 2 * Z]
    b_in = bias[2 * H + 2 * Z:2 * H + 3 * Z]
    b_hn = bias[2 * H + 3 * Z:2 * H + 4 * Z]
    b_out = bias[2 * H + 4 * Z:]

    freqs = jnp.exp(-math.log(10000.0)
                    * jnp.arange(half, dtype=jnp.float32) / max(half - 1, 1))
    args = t_per_batch[:, None] * freqs[None, :]
    emb = jnp.concatenate([jnp.sin(args), jnp.cos(args)], axis=-1)  # (B, H)

    w0x = model.w0xe[:, 0:X]
    pre0 = x @ w0x.T + emb @ model.w0t.T + b0
    if model.E > 0:
        w0e = model.w0xe[:, model.Xp:model.Xp + model.E]
        pre0 = pre0 + ext @ w0e.T
    h = jax.nn.silu(pre0)
    h = jax.nn.silu(h @ model.w1.T + b1)

    g = jnp.concatenate([h, z], axis=-1) @ model.wgru.T     # (B, 4Z)
    r = jax.nn.sigmoid(g[:, 0:Z] + b_r)
    u = jax.nn.sigmoid(g[:, Z:2 * Z] + b_u)
    n = jnp.tanh(g[:, 2 * Z:3 * Z] + b_in + r * (g[:, 3 * Z:4 * Z] + b_hn))
    z_next = (1.0 - u) * n + u * z
    pred_x = z_next @ model.wout.T + b_out
    loss = (pred_x - x_next) ** 2
    return pred_x, z_next, loss


if __name__ == "__main__":
    key = jax.random.PRNGKey(0)
    k_param, k_x, k_z, k_xn, k_ec, k_t = jax.random.split(key, 6)

    B, x_dim, z_dim, ext_dim = 32, 8, 16, 4
    cfg = dict(network_size=32, num_gru_layers=1, num_mlp_layers=2,
               self_condition=False)

    model = RNNUNetPallas((x_dim,), (z_dim,), ext_dim, cfg, k_param)

    x = jax.random.normal(k_x, (B, x_dim), jnp.float32)
    z_cond = jax.random.normal(k_z, (B, z_dim), jnp.float32)
    x_next = jax.random.normal(k_xn, (B, x_dim), jnp.float32)
    ext = jax.random.normal(k_ec, (B, ext_dim), jnp.float32)

    # ---- scalar-timestep fast path (SMEM) ------------------------------------
    t_step = 3
    pred_x, pred_z, loss = model.forward(x, t_step, z_cond, x_next, ext)
    jax.block_until_ready((pred_x, pred_z, loss))

    t_b = jnp.full((B,), float(t_step), jnp.float32)
    rx, rz, rl = _ref_forward(model, x, t_b, z_cond, x_next, ext)

    assert pred_x.shape == (B, x_dim)
    assert pred_z.shape == (B, z_dim)
    assert loss.shape == (B, x_dim)
    assert bool(jnp.all(jnp.isfinite(pred_x)))
    assert bool(jnp.all(jnp.isfinite(pred_z)))
    assert bool(jnp.all(loss >= 0.0))
    assert bool(jnp.allclose(pred_z, rz, atol=1e-4, rtol=1e-4))
    assert bool(jnp.allclose(pred_x, rx, atol=1e-4, rtol=1e-4))
    assert bool(jnp.allclose(loss, rl, atol=1e-4, rtol=1e-4))

    # ---- per-sample timestep path ---------------------------------------------
    t_vec = jax.random.randint(k_t, (B,), 0, 10).astype(jnp.float32)
    pred_x2, pred_z2, loss2 = model.forward(x, t_vec, z_cond, x_next, ext)
    jax.block_until_ready((pred_x2, pred_z2, loss2))
    rx2, rz2, rl2 = _ref_forward(model, x, t_vec, z_cond, x_next, ext)
    assert bool(jnp.allclose(pred_z2, rz2, atol=1e-4, rtol=1e-4))
    assert bool(jnp.allclose(pred_x2, rx2, atol=1e-4, rtol=1e-4))
    assert bool(jnp.allclose(loss2, rl2, atol=1e-4, rtol=1e-4))

    print("KERNEL_OK")
</pallas_src>

<mosaic_0001>
module attributes {stable_mosaic.version = 11 : i64} {
  func.func @_rnn_unet_kernel(%arg0: i32, %arg1: memref<40x128xf32, #tpu.memory_space<vmem>>, %arg2: memref<1x1xf32, #tpu.memory_space<smem>>, %arg3: memref<32x16xf32, #tpu.memory_space<vmem>>, %arg4: memref<32x32xf32, #tpu.memory_space<vmem>>, %arg5: memref<32x32xf32, #tpu.memory_space<vmem>>, %arg6: memref<64x48xf32, #tpu.memory_space<vmem>>, %arg7: memref<8x16xf32, #tpu.memory_space<vmem>>, %arg8: memref<136x1xf32, #tpu.memory_space<vmem>>, %arg9: memref<32x128xf32, #tpu.memory_space<vmem>>) attributes {dimension_semantics = [#tpu.dimension_semantics<parallel>], iteration_bounds = array<i64: 1>, scalar_prefetch = 0 : i64, scratch_operands = 0 : i64, tpu.core_type = #tpu.core_type<tc>, window_params = [{transform_indices = @transform_0, window_bounds = array<i64: 40, 128>}, {transform_indices = @transform_1, window_bounds = array<i64: 1, 1>}, {pipeline_mode = #tpu.pipeline_mode<synchronous>, transform_indices = @transform_2, window_bounds = array<i64: 32, 16>}, {pipeline_mode = #tpu.pipeline_mode<synchronous>, transform_indices = @transform_3, window_bounds = array<i64: 32, 32>}, {pipeline_mode = #tpu.pipeline_mode<synchronous>, transform_indices = @transform_4, window_bounds = array<i64: 32, 32>}, {pipeline_mode = #tpu.pipeline_mode<synchronous>, transform_indices = @transform_5, window_bounds = array<i64: 64, 48>}, {pipeline_mode = #tpu.pipeline_mode<synchronous>, transform_indices = @transform_6, window_bounds = array<i64: 8, 16>}, {pipeline_mode = #tpu.pipeline_mode<synchronous>, transform_indices = @transform_7, window_bounds = array<i64: 136, 1>}, {transform_indices = @transform_8, window_bounds = array<i64: 32, 128>}]} {
    %c0 = arith.constant 0 : index
    %c0_0 = arith.constant 0 : index
    %0 = vector.load %arg8[%c0, %c0_0] : memref<136x1xf32, #tpu.memory_space<vmem>>, vector<136x1xf32>
    %1 = vector.extract_strided_slice %0 {offsets = [0, 0], sizes = [32, 1], strides = [1, 1]} : vector<136x1xf32> to vector<32x1xf32>
    %2 = vector.extract_strided_slice %0 {offsets = [32, 0], sizes = [32, 1], strides = [1, 1]} : vector<136x1xf32> to vector<32x1xf32>
    %3 = vector.extract_strided_slice %0 {offsets = [64, 0], sizes = [16, 1], strides = [1, 1]} : vector<136x1xf32> to vector<16x1xf32>
    %4 = vector.extract_strided_slice %0 {offsets = [80, 0], sizes = [16, 1], strides = [1, 1]} : vector<136x1xf32> to vector<16x1xf32>
    %5 = vector.extract_strided_slice %0 {offsets = [96, 0], sizes = [16, 1], strides = [1, 1]} : vector<136x1xf32> to vector<16x1xf32>
    %6 = vector.extract_strided_slice %0 {offsets = [112, 0], sizes = [16, 1], strides = [1, 1]} : vector<136x1xf32> to vector<16x1xf32>
    %7 = vector.extract_strided_slice %0 {offsets = [128, 0], sizes = [8, 1], strides = [1, 1]} : vector<136x1xf32> to vector<8x1xf32>
    %8 = tpu.iota {dimensions = array<i32: 0>} : vector<16x1xi32>
    %9 = arith.sitofp %8 : vector<16x1xi32> to vector<16x1xf32>
    %cst = arith.constant -0.614022672 : f32
    %10 = vector.broadcast %cst : f32 to vector<16x1xf32>
    %11 = arith.mulf %9, %10 : vector<16x1xf32>
    %12 = math.exp %11 : vector<16x1xf32>
    %c0_1 = arith.constant 0 : index
    %c0_2 = arith.constant 0 : index
    %13 = memref.load %arg2[%c0_1, %c0_2] : memref<1x1xf32, #tpu.memory_space<smem>>
    %14 = vector.broadcast %13 : f32 to vector<16x1xf32>
    %15 = arith.mulf %12, %14 : vector<16x1xf32>
    %16 = math.sin %15 : vector<16x1xf32>
    %17 = math.cos %15 : vector<16x1xf32>
    %18 = tpu.concatenate %16, %17 in 0 : vector<16x1xf32>, vector<16x1xf32> -> vector<32x1xf32>
    %c0_3 = arith.constant 0 : index
    %c0_4 = arith.constant 0 : index
    %19 = vector.load %arg4[%c0_3, %c0_4] : memref<32x32xf32, #tpu.memory_space<vmem>>, vector<32x32xf32>
    %cst_5 = arith.constant dense<0.000000e+00> : vector<32x1xf32>
    %20 = tpu.matmul %19, %18, %cst_5 {dimension_numbers = #tpu.dot_dimension_numbers<[1], [0], [0], [1], [0, 0, 1, 1], [], []>} : vector<32x32xf32>, vector<32x1xf32>, vector<32x1xf32> -> vector<32x1xf32>
    %c0_6 = arith.constant 0 : index
    %c0_7 = arith.constant 0 : index
    %21 = vector.load %arg1[%c0_6, %c0_7] : memref<40x128xf32, #tpu.memory_space<vmem>>, vector<16x128xf32>
    %c16 = arith.constant 16 : index
    %c0_8 = arith.constant 0 : index
    %22 = vector.load %arg1[%c16, %c0_8] : memref<40x128xf32, #tpu.memory_space<vmem>>, vector<16x128xf32>
    %c32 = arith.constant 32 : index
    %c0_9 = arith.constant 0 : index
    %23 = vector.load %arg1[%c32, %c0_9] : memref<40x128xf32, #tpu.memory_space<vmem>>, vector<8x128xf32>
    %c0_10 = arith.constant 0 : index
    %c0_11 = arith.constant 0 : index
    %24 = vector.load %arg3[%c0_10, %c0_11] : memref<32x16xf32, #tpu.memory_space<vmem>>, vector<32x16xf32>
    %cst_12 = arith.constant dense<0.000000e+00> : vector<32x128xf32>
    %25 = tpu.matmul %24, %21, %cst_12 {dimension_numbers = #tpu.dot_dimension_numbers<[1], [0], [0], [1], [0, 0, 1, 1], [], []>} : vector<32x16xf32>, vector<16x128xf32>, vector<32x128xf32> -> vector<32x128xf32>
    %26 = vector.broadcast %20 : vector<32x1xf32> to vector<32x128xf32>
    %27 = arith.addf %25, %26 : vector<32x128xf32>
    %28 = vector.broadcast %1 : vector<32x1xf32> to vector<32x128xf32>
    %29 = arith.addf %27, %28 : vector<32x128xf32>
    %30 = arith.negf %29 : vector<32x128xf32>
    %31 = math.exp %30 : vector<32x128xf32>
    %cst_13 = arith.constant 1.000000e+00 : f32
    %32 = vector.broadcast %cst_13 : f32 to vector<32x128xf32>
    %33 = arith.addf %32, %31 : vector<32x128xf32>
    %34 = arith.divf %32, %33 : vector<32x128xf32>
    %35 = arith.mulf %29, %34 : vector<32x128xf32>
    %c0_14 = arith.constant 0 : index
    %c0_15 = arith.constant 0 : index
    %36 = vector.load %arg5[%c0_14, %c0_15] : memref<32x32xf32, #tpu.memory_space<vmem>>, vector<32x32xf32>
    %cst_16 = arith.constant dense<0.000000e+00> : vector<32x128xf32>
    %37 = tpu.matmul %36, %35, %cst_16 {dimension_numbers = #tpu.dot_dimension_numbers<[1], [0], [0], [1], [0, 0, 1, 1], [], []>} : vector<32x32xf32>, vector<32x128xf32>, vector<32x128xf32> -> vector<32x128xf32>
    %38 = vector.broadcast %2 : vector<32x1xf32> to vector<32x128xf32>
    %39 = arith.addf %37, %38 : vector<32x128xf32>
    %40 = arith.negf %39 : vector<32x128xf32>
    %41 = math.exp %40 : vector<32x128xf32>
    %cst_17 = arith.constant 1.000000e+00 : f32
    %42 = vector.broadcast %cst_17 : f32 to vector<32x128xf32>
    %43 = arith.addf %42, %41 : vector<32x128xf32>
    %44 = arith.divf %42, %43 : vector<32x128xf32>
    %45 = arith.mulf %39, %44 : vector<32x128xf32>
    %46 = tpu.concatenate %45, %22 in 0 : vector<32x128xf32>, vector<16x128xf32> -> vector<48x128xf32>
    %c0_18 = arith.constant 0 : index
    %c0_19 = arith.constant 0 : index
    %47 = vector.load %arg6[%c0_18, %c0_19] : memref<64x48xf32, #tpu.memory_space<vmem>>, vector<64x48xf32>
    %cst_20 = arith.constant dense<0.000000e+00> : vector<64x128xf32>
    %48 = tpu.matmul %47, %46, %cst_20 {dimension_numbers = #tpu.dot_dimension_numbers<[1], [0], [0], [1], [0, 0, 1, 1], [], []>} : vector<64x48xf32>, vector<48x128xf32>, vector<64x128xf32> -> vector<64x128xf32>
    %49 = vector.extract_strided_slice %48 {offsets = [0, 0], sizes = [16, 128], strides = [1, 1]} : vector<64x128xf32> to vector<16x128xf32>
    %50 = vector.broadcast %3 : vector<16x1xf32> to vector<16x128xf32>
    %51 = arith.addf %49, %50 : vector<16x128xf32>
    %52 = arith.negf %51 : vector<16x128xf32>
    %53 = math.exp %52 : vector<16x128xf32>
    %cst_21 = arith.constant 1.000000e+00 : f32
    %54 = vector.broadcast %cst_21 : f32 to vector<16x128xf32>
    %55 = arith.addf %54, %53 : vector<16x128xf32>
    %56 = arith.divf %54, %55 : vector<16x128xf32>
    %57 = vector.extract_strided_slice %48 {offsets = [16, 0], sizes = [16, 128], strides = [1, 1]} : vector<64x128xf32> to vector<16x128xf32>
    %58 = vector.broadcast %4 : vector<16x1xf32> to vector<16x128xf32>
    %59 = arith.addf %57, %58 : vector<16x128xf32>
    %60 = arith.negf %59 : vector<16x128xf32>
    %61 = math.exp %60 : vector<16x128xf32>
    %cst_22 = arith.constant 1.000000e+00 : f32
    %62 = vector.broadcast %cst_22 : f32 to vector<16x128xf32>
    %63 = arith.addf %62, %61 : vector<16x128xf32>
    %64 = arith.divf %62, %63 : vector<16x128xf32>
    %65 = vector.extract_strided_slice %48 {offsets = [32, 0], sizes = [16, 128], strides = [1, 1]} : vector<64x128xf32> to vector<16x128xf32>
    %66 = vector.broadcast %5 : vector<16x1xf32> to vector<16x128xf32>
    %67 = arith.addf %65, %66 : vector<16x128xf32>
    %68 = vector.extract_strided_slice %48 {offsets = [48, 0], sizes = [16, 128], strides = [1, 1]} : vector<64x128xf32> to vector<16x128xf32>
    %69 = vector.broadcast %6 : vector<16x1xf32> to vector<16x128xf32>
    %70 = arith.addf %68, %69 : vector<16x128xf32>
    %71 = arith.mulf %56, %70 : vector<16x128xf32>
    %72 = arith.addf %67, %71 : vector<16x128xf32>
    %73 = math.tanh %72 : vector<16x128xf32>
    %cst_23 = arith.constant 1.000000e+00 : f32
    %74 = vector.broadcast %cst_23 : f32 to vector<16x128xf32>
    %75 = arith.subf %74, %64 : vector<16x128xf32>
    %76 = arith.mulf %75, %73 : vector<16x128xf32>
    %77 = arith.mulf %64, %22 : vector<16x128xf32>
    %78 = arith.addf %76, %77 : vector<16x128xf32>
    %c0_24 = arith.constant 0 : index
    %c0_25 = arith.constant 0 : index
    %79 = vector.load %arg7[%c0_24, %c0_25] : memref<8x16xf32, #tpu.memory_space<vmem>>, vector<8x16xf32>
    %cst_26 = arith.constant dense<0.000000e+00> : vector<8x128xf32>
    %80 = tpu.matmul %79, %78, %cst_26 {dimension_numbers = #tpu.dot_dimension_numbers<[1], [0], [0], [1], [0, 0, 1, 1], [], []>} : vector<8x16xf32>, vector<16x128xf32>, vector<8x128xf32> -> vector<8x128xf32>
    %81 = vector.broadcast %7 : vector<8x1xf32> to vector<8x128xf32>
    %82 = arith.addf %80, %81 : vector<8x128xf32>
    %83 = arith.subf %82, %23 : vector<8x128xf32>
    %c0_27 = arith.constant 0 : index
    %c0_28 = arith.constant 0 : index
    %84 = vector.load %arg9[%c0_27, %c0_28] : memref<32x128xf32, #tpu.memory_space<vmem>>, vector<8x128xf32>
    tpu.vector_store %arg9[%c0_27, %c0_28], %82 {strides = array<i32>} : memref<32x128xf32, #tpu.memory_space<vmem>>, vector<8x128xf32>,
    %c8 = arith.constant 8 : index
    %c0_29 = arith.constant 0 : index
    %85 = vector.load %arg9[%c8, %c0_29] : memref<32x128xf32, #tpu.memory_space<vmem>>, vector<16x128xf32>
    tpu.vector_store %arg9[%c8, %c0_29], %78 {strides = array<i32>} : memref<32x128xf32, #tpu.memory_space<vmem>>, vector<16x128xf32>,
    %86 = arith.mulf %83, %83 : vector<8x128xf32>
    %c24 = arith.constant 24 : index
    %c0_30 = arith.constant 0 : index
    %87 = vector.load %arg9[%c24, %c0_30] : memref<32x128xf32, #tpu.memory_space<vmem>>, vector<8x128xf32>
    tpu.vector_store %arg9[%c24, %c0_30], %86 {strides = array<i32>} : memref<32x128xf32, #tpu.memory_space<vmem>>, vector<8x128xf32>,
    return
  }
  func.func @transform_0(%arg0: i32) -> (i32, i32) {
    %c0_i32 = arith.constant 0 : i32
    %c0_i32_0 = arith.constant 0 : i32
    return %c0_i32, %arg0 : i32, i32
  }
  func.func @transform_1(%arg0: i32) -> (i32, i32) {
    %c0_i32 = arith.constant 0 : i32
    %c0_i32_0 = arith.constant 0 : i32
    %c0_i32_1 = arith.constant 0 : i32
    return %c0_i32, %c0_i32_0 : i32, i32
  }
  func.func @transform_2(%arg0: i32) -> (i32, i32) {
    %c0_i32 = arith.constant 0 : i32
    %c0_i32_0 = arith.constant 0 : i32
    %c0_i32_1 = arith.constant 0 : i32
    return %c0_i32, %c0_i32_0 : i32, i32
  }
  func.func @transform_3(%arg0: i32) -> (i32, i32) {
    %c0_i32 = arith.constant 0 : i32
    %c0_i32_0 = arith.constant 0 : i32
    %c0_i32_1 = arith.constant 0 : i32
    return %c0_i32, %c0_i32_0 : i32, i32
  }
  func.func @transform_4(%arg0: i32) -> (i32, i32) {
    %c0_i32 = arith.constant 0 : i32
    %c0_i32_0 = arith.constant 0 : i32
    %c0_i32_1 = arith.constant 0 : i32
    return %c0_i32, %c0_i32_0 : i32, i32
  }
  func.func @transform_5(%arg0: i32) -> (i32, i32) {
    %c0_i32 = arith.constant 0 : i32
    %c0_i32_0 = arith.constant 0 : i32
    %c0_i32_1 = arith.constant 0 : i32
    return %c0_i32, %c0_i32_0 : i32, i32
  }
  func.func @transform_6(%arg0: i32) -> (i32, i32) {
    %c0_i32 = arith.constant 0 : i32
    %c0_i32_0 = arith.constant 0 : i32
    %c0_i32_1 = arith.constant 0 : i32
    return %c0_i32, %c0_i32_0 : i32, i32
  }
  func.func @transform_7(%arg0: i32) -> (i32, i32) {
    %c0_i32 = arith.constant 0 : i32
    %c0_i32_0 = arith.constant 0 : i32
    %c0_i32_1 = arith.constant 0 : i32
    return %c0_i32, %c0_i32_0 : i32, i32
  }
  func.func @transform_8(%arg0: i32) -> (i32, i32) {
    %c0_i32 = arith.constant 0 : i32
    %c0_i32_0 = arith.constant 0 : i32
    return %c0_i32, %arg0 : i32, i32
  }
}

</mosaic_0001>

<llo_original>
// kernel: tpu_custom_call.1
$region0: #{tpu_custom_call.1}
  #allocation0 [shape = 'u32[]', space=smem, size = 0x4, offset = 0x4, fixed_abs, tag = 'smem constant byte address 0x4 - core index']
  #allocation1 [shape = 'u32[144,128]{1,0:T(1,128)}', space=vmem, size = 0x12000, scoped, tag = 'internal scratch']
  #allocation2 [shape = 'f32[1,1]{1,0:T(1,128)S(6)}', space=smem, size = 0x200, scoped, tag = 'scoped memory for tpu_custom_call.1']
  %s0 = inlined_call_operand.vmem [shape: f32[40,128], index: 0, kind: input, shape index: {}]
  %s1 = inlined_call_operand.<no memory space> [shape: f32[1,1], index: 1, kind: input, shape index: {}]
  %s2 = inlined_call_operand.vmem [shape: f32[32,16], index: 2, kind: input, shape index: {}]
  %s3 = inlined_call_operand.vmem [shape: f32[32,32], index: 3, kind: input, shape index: {}]
  %s4 = inlined_call_operand.vmem [shape: f32[32,32], index: 4, kind: input, shape index: {}]
  %s5 = inlined_call_operand.vmem [shape: f32[64,48], index: 5, kind: input, shape index: {}]
  %s6 = inlined_call_operand.vmem [shape: f32[8,16], index: 6, kind: input, shape index: {}]
  %s7 = inlined_call_operand.vmem [shape: f32[136,1], index: 7, kind: input, shape index: {}]
  %s8 = inlined_call_operand.hbm [shape: f32[32,128], index: 8, kind: output, shape index: {}]
  %s9 = sld [smem:[#allocation0]]
  $region42: #{tpu_custom_call.1} parent=0
    _
  %s11 = ssub.s32 1, %s9
  %s12 = scalar_select 0, %s11, %s9
  %13 = sst [smem:[#allocation2]] %s1
  $region1: #{tpu_custom_call.1} parent=0
    #allocation3 [shape = 'u8[16384]{0}', space=vmem, size = 0x4000, scoped, tag = 'output window, operand 0, single buffered']
    #allocation4 [shape = 's32[1]{0}', space=sflag, size = 0x4, scoped, tag = 'scoped memory for tpu_custom_call.1']
    %14 = vsyncpa [#allocation4], 0
    // Predicated region
    $region2: #{tpu_custom_call.1} parent=1 // pred_check
      _
    $region3: #{tpu_custom_call.1} parent=1 // pred_check_branch
      %16 = sbr.rel (0) target = $region5
    $region4: #{tpu_custom_call.1} parent=1 // pred_region
      _
    $region5: #{tpu_custom_call.1} parent=1 // pred_fallthru
      _
    // Predicated region
    $region6: #{tpu_custom_call.1} parent=1 // pred_check
      _
    $region7: #{tpu_custom_call.1} parent=1 // pred_check_branch
      %18 = sbr.rel (0) target = $region9
    $region8: #{tpu_custom_call.1} parent=1 // pred_region
      _
    $region9: #{tpu_custom_call.1} parent=1 // pred_fallthru
      _
    // Predicated region
    $region10: #{tpu_custom_call.1} parent=1 // pred_check
      _
    $region11: #{tpu_custom_call.1} parent=1 // pred_check_branch
      %20 = sbr.rel (0) target = $region13
    $region12: #{tpu_custom_call.1} parent=1 // pred_region
      _
    $region13: #{tpu_custom_call.1} parent=1 // pred_fallthru
      _
    // Predicated region
    $region14: #{tpu_custom_call.1} parent=1 // pred_check
      _
    $region15: #{tpu_custom_call.1} parent=1 // pred_check_branch
      %22 = sbr.rel (0) target = $region17
    $region16: #{tpu_custom_call.1} parent=1 // pred_region
      _
    $region17: #{tpu_custom_call.1} parent=1 // pred_fallthru
      _
    // Predicated region
    $region18: #{tpu_custom_call.1} parent=1 // pred_check
      _
    $region19: #{tpu_custom_call.1} parent=1 // pred_check_branch
      %24 = sbr.rel (0) target = $region21
    $region20: #{tpu_custom_call.1} parent=1 // pred_region
      _
    $region21: #{tpu_custom_call.1} parent=1 // pred_fallthru
      _
    // Predicated region
    $region22: #{tpu_custom_call.1} parent=1 // pred_check
      _
    $region23: #{tpu_custom_call.1} parent=1 // pred_check_branch
      %26 = sbr.rel (0) target = $region25
    $region24: #{tpu_custom_call.1} parent=1 // pred_region
      _
    $region25: #{tpu_custom_call.1} parent=1 // pred_fallthru
      _
    // Predicated region
    $region26: #{tpu_custom_call.1} parent=1 // pred_check
      _
    $region27: #{tpu_custom_call.1} parent=1 // pred_check_branch
      %28 = sbr.rel (0) target = $region29
    $region28: #{tpu_custom_call.1} parent=1 // pred_region
      _
    $region29: #{tpu_custom_call.1} parent=1 // pred_fallthru
      _
    // Predicated region
    $region30: #{tpu_custom_call.1} parent=1 // pred_check
      _
    $region31: #{tpu_custom_call.1} parent=1 // pred_check_branch
      %30 = sbr.rel (0) target = $region33
    $region32: #{tpu_custom_call.1} parent=1 // pred_region
      _
    $region33: #{tpu_custom_call.1} parent=1 // pred_fallthru
      _
    %v31 = vld [vmem:[%s7] sm:$0xff]
    %v32 = vld [vmem:[%s7 + $0x8] sm:$0xff]
    %v33 = vld [vmem:[%s7 + $0x10] sm:$0xff]
    %v34 = vld [vmem:[%s7 + $0x18] sm:$0xff]
    %v35 = vld [vmem:[%s7 + $0x20] sm:$0xff]
    %v36 = vld [vmem:[%s7 + $0x28] sm:$0xff]
    %v37 = vld [vmem:[%s7 + $0x30] sm:$0xff]
    %v38 = vld [vmem:[%s7 + $0x38] sm:$0xff]
    %v39 = vld [vmem:[%s7 + $0x40] sm:$0xff]
    %v40 = vld [vmem:[%s7 + $0x48] sm:$0xff]
    %v41 = vld [vmem:[%s7 + $0x50] sm:$0xff]
    %v42 = vld [vmem:[%s7 + $0x58] sm:$0xff]
    %v43 = vld [vmem:[%s7 + $0x60] sm:$0xff]
    %v44 = vld [vmem:[%s7 + $0x68] sm:$0xff]
    %v45 = vld [vmem:[%s7 + $0x70] sm:$0xff]
    %v46 = vld [vmem:[%s7 + $0x78] sm:$0xff]
    %v47 = vld [vmem:[%s7 + $0x80] sm:$0xff]
    %v48 = vlaneseq
    %v49 = vshrl.u32 %v48, 7
    %v50 = vadd.s32 %v49, 8
    %v51 = vcvt.s32.f32 %v49
    %v52 = vcvt.s32.f32 %v50
    %v53 = vmul.f32 %v51, -0.6140227
    %v54 = vmul.f32 %v52, -0.6140227
    %v55 = vmul.f32 %v53, 1.442695
    %v56 = vpow.pop %v55
    %v57 = vmul.f32 %v54, 1.442695
    %v58 = vpow.pop %v57
    %s59 = sld [smem:[#allocation2]]
    %v60 = vstv %s59
    %v61 = vmul.f32 %v56, %v60
    %v62 = vmul.f32 %v58, %v60
    %v63 = vand.u32 2147483647, %v61
    %vm64 = vcmp.le.f32.partialorder %v63, 0.7853982
    %vm65 = vcmp.lt.s32.totalorder %v61, 0
    %v66 = vand.u32 %v61, 2139095040
    %v67 = vshrl.u32 %v66, 23
    %v68 = vsub.s32 %v67, 127
    %v69 = vand.u32 2147483647, %v61
    %v70 = vand.u32 %v69, 8388607
    %v71 = vor.u32 %v70, 8388608
    %v72 = vsub.s32 0, %v71
    %v73 = vadd.s32 %v68, 1
    %vm74 = vcmp.gt.s32.totalorder %v73, 0
    %v75 = vsel %vm74, %v73, 0
    %v76 = vshrl.u32 %v75, 5
    %v77 = vand.u32 %v75, 31
    %v78 = vsub.s32 32, %v77
    %v79 = vshrl.u32 683565275, %v78
    %v80 = vshll.u32 683565275, %v77
    %v81 = vshrl.u32 2475754826, %v78
    %v82 = vor.u32 %v80, %v81
    %v83 = vshll.u32 2475754826, %v77
    %v84 = vshrl.u32 2131351028, %v78
    %v85 = vor.u32 %v83, %v84
    %v86 = vshll.u32 2131351028, %v77
    %v87 = vshrl.u32 2102212464, %v78
    %v88 = vor.u32 %v86, %v87
    %v89 = vshll.u32 2102212464, %v77
    %v90 = vshrl.u32 920167782, %v78
    %v91 = vor.u32 %v89, %v90
    %v92 = vshll.u32 920167782, %v77
    %v93 = vshrl.u32 1326507024, %v78
    %v94 = vor.u32 %v92, %v93
    %vm95 = vcmp.lt.s32.totalorder %v76, 1
    %vm96 = vcmp.lt.s32.totalorder %v76, 2
    %vm97 = vcmp.lt.s32.totalorder %v76, 3
    %vm98 = vcmp.lt.s32.totalorder %v76, 4
    %v99 = vsel %vm95, %v79, %v82
    %v100 = vsel %vm98, %v88, 2102212464
    %v101 = vsel %vm97, %v85, %v100
    %v102 = vsel %vm96, %v99, %v101
    %v103 = vsel %vm95, %v82, %v85
    %v104 = vsel %vm98, %v91, 920167782
    %v105 = vsel %vm97, %v88, %v104
    %v106 = vsel %vm96, %v103, %v105
    %v107 = vsel %vm95, %v85, %v88
    %v108 = vsel %vm98, %v94, 1326507024
    %v109 = vsel %vm97, %v91, %v108
    %v110 = vsel %vm96, %v107, %v109
    %v111 = vshll.u32 %v71, 8
    %v112 = vmul.u32.u64.compose %v111, %v110
    %v113 = vextract.low.u32 %v112
    %v114 = vextract.high.u32 %v112
    %v115 = vmul.u32.u64.compose %v111, %v106
    %v116 = vextract.low.u32 %v115
    %v117 = vextract.high.u32 %v115
    %v118 = vmul.u32 %v111, %v102
    %v119 = vadd.s32 %v114, %v116
    %vm120 = vc.u32 %v114, %v116
    %v121 = vadd.s32 %v117, 1
    %v122 = vsel %vm120, %v121, %v117
    %v123 = vadd.s32 %v118, %v122
    %v124 = vadd.s32 %v123, 536870912
    %v125 = vshrl.u32 %v124, 30
    %v126 = vshll.u32 %v125, 30
    %v127 = vsub.s32 %v123, %v126
    %vm128 = vcmp.lt.s32.totalorder %v127, 0
    %v129 = vsub.s32 0, %v127
    %v130 = vsel %vm128, %v129, %v127
    %v131 = vclz %v130
    %v132 = vsub.s32 %v131, 2
    %vm133 = vcmp.gt.s32.totalorder 0, %v132
    %v134 = vsel %vm133, 0, %v132
    %v135 = vsub.s32 32, %v134
    %v136 = vshll.u32 %v127, %v134
    %v137 = vshrl.u32 %v119, %v135
    %v138 = vor.u32 %v136, %v137
    %v139 = vsub.s32 4294967266, %v134
    %v140 = vadd.s32 %v139, 127
    %v141 = vshll.u32 %v140, 23
    %v142 = vor.u32 4788187, %v141
    %v143 = vand.u32 2147483647, %v142
    %v145 = vcvt.s32.f32 %v138
    %v146 = vmul.f32 %v145, %v143
    %v147 = vxor.u32 %v146, 2147483648
    %v148 = vsel %vm65, %v147, %v146
    %v149 = vsub.s32 4, %v125
    %v150 = vsel %vm65, %v149, %v125
    %v151 = vsel %vm64, %v61, %v148
    %v152 = vsel %vm64, 0, %v150
    %v153 = vcosq.f32.pop %v151
    %v154 = vsinq.f32.pop %v151
    %vm155 = vweird.f32 %v61
    %v156 = vadd.s32 %v152, 3
    %v157 = vand.u32 %v156, 3
    %vm158 = vcmp.lt.s32.totalorder %v157, 2
    %vm159 = vcmp.eq.s32.totalorder %v157, 0
    %v160 = vxor.u32 %v154, 2147483648
    %v161 = vsel %vm159, %v153, %v160
    %vm162 = vcmp.eq.s32.totalorder %v157, 2
    %v163 = vxor.u32 %v153, 2147483648
    %v164 = vsel %vm162, %v163, %v154
    %v165 = vsel %vm158, %v161, %v164
    %v166 = vsel %vm155, nan, %v165
    %v167 = vand.u32 2147483647, %v62
    %vm168 = vcmp.le.f32.partialorder %v167, 0.7853982
    %vm169 = vcmp.lt.s32.totalorder %v62, 0
    %v170 = vand.u32 %v62, 2139095040
    %v171 = vshrl.u32 %v170, 23
    %v172 = vsub.s32 %v171, 127
    %v173 = vand.u32 2147483647, %v62
    %v174 = vand.u32 %v173, 8388607
    %v175 = vor.u32 %v174, 8388608
    %v176 = vsub.s32 0, %v175
    %v177 = vadd.s32 %v172, 1
    %vm178 = vcmp.gt.s32.totalorder %v177, 0
    %v179 = vsel %vm178, %v177, 0
    %v180 = vshrl.u32 %v179, 5
    %v181 = vand.u32 %v179, 31
    %v182 = vsub.s32 32, %v181
    %v183 = vshrl.u32 683565275, %v182
    %v184 = vshll.u32 683565275, %v181
    %v185 = vshrl.u32 2475754826, %v182
    %v186 = vor.u32 %v184, %v185
    %v187 = vshll.u32 2475754826, %v181
    %v188 = vshrl.u32 2131351028, %v182
    %v189 = vor.u32 %v187, %v188
    %v190 = vshll.u32 2131351028, %v181
    %v191 = vshrl.u32 2102212464, %v182
    %v192 = vor.u32 %v190, %v191
    %v193 = vshll.u32 2102212464, %v181
    %v194 = vshrl.u32 920167782, %v182
    %v195 = vor.u32 %v193, %v194
    %v196 = vshll.u32 920167782, %v181
    %v197 = vshrl.u32 1326507024, %v182
    %v198 = vor.u32 %v196, %v197
    %vm199 = vcmp.lt.s32.totalorder %v180, 1
    %vm200 = vcmp.lt.s32.totalorder %v180, 2
    %vm201 = vcmp.lt.s32.totalorder %v180, 3
    %vm202 = vcmp.lt.s32.totalorder %v180, 4
    %v203 = vsel %vm199, %v183, %v186
    %v204 = vsel %vm202, %v192, 2102212464
    %v205 = vsel %vm201, %v189, %v204
    %v206 = vsel %vm200, %v203, %v205
    %v207 = vsel %vm199, %v186, %v189
    %v208 = vsel %vm202, %v195, 920167782
    %v209 = vsel %vm201, %v192, %v208
    %v210 = vsel %vm200, %v207, %v209
    %v211 = vsel %vm199, %v189, %v192
    %v212 = vsel %vm202, %v198, 1326507024
    %v213 = vsel %vm201, %v195, %v212
    %v214 = vsel %vm200, %v211, %v213
    %v215 = vshll.u32 %v175, 8
    %v216 = vmul.u32.u64.compose %v215, %v214
    %v217 = vextract.low.u32 %v216
    %v218 = vextract.high.u32 %v216
    %v219 = vmul.u32.u64.compose %v215, %v210
    %v220 = vextract.low.u32 %v219
    %v221 = vextract.high.u32 %v219
    %v222 = vmul.u32 %v215, %v206
    %v223 = vadd.s32 %v218, %v220
    %vm224 = vc.u32 %v218, %v220
    %v225 = vadd.s32 %v221, 1
    %v226 = vsel %vm224, %v225, %v221
    %v227 = vadd.s32 %v222, %v226
    %v228 = vadd.s32 %v227, 536870912
    %v229 = vshrl.u32 %v228, 30
    %v230 = vshll.u32 %v229, 30
    %v231 = vsub.s32 %v227, %v230
    %vm232 = vcmp.lt.s32.totalorder %v231, 0
    %v233 = vsub.s32 0, %v231
    %v234 = vsel %vm232, %v233, %v231
    %v235 = vclz %v234
    %v236 = vsub.s32 %v235, 2
    %vm237 = vcmp.gt.s32.totalorder 0, %v236
    %v238 = vsel %vm237, 0, %v236
    %v239 = vsub.s32 32, %v238
    %v240 = vshll.u32 %v231, %v238
    %v241 = vshrl.u32 %v223, %v239
    %v242 = vor.u32 %v240, %v241
    %v243 = vsub.s32 4294967266, %v238
    %v244 = vadd.s32 %v243, 127
    %v245 = vshll.u32 %v244, 23
    %v246 = vor.u32 4788187, %v245
    %v247 = vand.u32 2147483647, %v246
    %v249 = vcvt.s32.f32 %v242
    %v250 = vmul.f32 %v249, %v247
    %v251 = vxor.u32 %v250, 2147483648
    %v252 = vsel %vm169, %v251, %v250
    %v253 = vsub.s32 4, %v229
    %v254 = vsel %vm169, %v253, %v229
    %v255 = vsel %vm168, %v62, %v252
    %v256 = vsel %vm168, 0, %v254
    %v257 = vcosq.f32.pop %v255
    %v258 = vsinq.f32.pop %v255
    %vm259 = vweird.f32 %v62
    %v260 = vadd.s32 %v256, 3
    %v261 = vand.u32 %v260, 3
    %vm262 = vcmp.lt.s32.totalorder %v261, 2
    %vm263 = vcmp.eq.s32.totalorder %v261, 0
    %v264 = vxor.u32 %v258, 2147483648
    %v265 = vsel %vm263, %v257, %v264
    %vm266 = vcmp.eq.s32.totalorder %v261, 2
    %v267 = vxor.u32 %v257, 2147483648
    %v268 = vsel %vm266, %v267, %v258
    %v269 = vsel %vm262, %v265, %v268
    %v270 = vsel %vm259, nan, %v269
    %v271 = vand.u32 2147483647, %v61
    %vm272 = vcmp.le.f32.partialorder %v271, 0.7853982
    %vm273 = vcmp.lt.s32.totalorder %v61, 0
    %v274 = vand.u32 %v61, 2139095040
    %v275 = vshrl.u32 %v274, 23
    %v276 = vsub.s32 %v275, 127
    %v277 = vand.u32 2147483647, %v61
    %v278 = vand.u32 %v277, 8388607
    %v279 = vor.u32 %v278, 8388608
    %v280 = vsub.s32 0, %v279
    %v281 = vadd.s32 %v276, 1
    %vm282 = vcmp.gt.s32.totalorder %v281, 0
    %v283 = vsel %vm282, %v281, 0
    %v284 = vshrl.u32 %v283, 5
    %v285 = vand.u32 %v283, 31
    %v286 = vsub.s32 32, %v285
    %v287 = vshrl.u32 683565275, %v286
    %v288 = vshll.u32 683565275, %v285
    %v289 = vshrl.u32 2475754826, %v286
    %v290 = vor.u32 %v288, %v289
    %v291 = vshll.u32 2475754826, %v285
    %v292 = vshrl.u32 2131351028, %v286
    %v293 = vor.u32 %v291, %v292
    %v294 = vshll.u32 2131351028, %v285
    %v295 = vshrl.u32 2102212464, %v286
    %v296 = vor.u32 %v294, %v295
    %v297 = vshll.u32 2102212464, %v285
    %v298 = vshrl.u32 920167782, %v286
    %v299 = vor.u32 %v297, %v298
    %v300 = vshll.u32 920167782, %v285
    %v301 = vshrl.u32 1326507024, %v286
    %v302 = vor.u32 %v300, %v301
    %vm303 = vcmp.lt.s32.totalorder %v284, 1
    %vm304 = vcmp.lt.s32.totalorder %v284, 2
    %vm305 = vcmp.lt.s32.totalorder %v284, 3
    %vm306 = vcmp.lt.s32.totalorder %v284, 4
    %v307 = vsel %vm303, %v287, %v290
    %v308 = vsel %vm306, %v296, 2102212464
    %v309 = vsel %vm305, %v293, %v308
    %v310 = vsel %vm304, %v307, %v309
    %v311 = vsel %vm303, %v290, %v293
    %v312 = vsel %vm306, %v299, 920167782
    %v313 = vsel %vm305, %v296, %v312
    %v314 = vsel %vm304, %v311, %v313
    %v315 = vsel %vm303, %v293, %v296
    %v316 = vsel %vm306, %v302, 1326507024
    %v317 = vsel %vm305, %v299, %v316
    %v318 = vsel %vm304, %v315, %v317
    %v319 = vshll.u32 %v279, 8
    %v320 = vmul.u32.u64.compose %v319, %v318
    %v321 = vextract.low.u32 %v320
    %v322 = vextract.high.u32 %v320
    %v323 = vmul.u32.u64.compose %v319, %v314
    %v324 = vextract.low.u32 %v323
    %v325 = vextract.high.u32 %v323
    %v326 = vmul.u32 %v319, %v310
    %v327 = vadd.s32 %v322, %v324
    %vm328 = vc.u32 %v322, %v324
    %v329 = vadd.s32 %v325, 1
    %v330 = vsel %vm328, %v329, %v325
    %v331 = vadd.s32 %v326, %v330
    %v332 = vadd.s32 %v331, 536870912
    %v333 = vshrl.u32 %v332, 30
    %v334 = vshll.u32 %v333, 30
    %v335 = vsub.s32 %v331, %v334
    %vm336 = vcmp.lt.s32.totalorder %v335, 0
    %v337 = vsub.s32 0, %v335
    %v338 = vsel %vm336, %v337, %v335
    %v339 = vclz %v338
    %v340 = vsub.s32 %v339, 2
    %vm341 = vcmp.gt.s32.totalorder 0, %v340
    %v342 = vsel %vm341, 0, %v340
    %v343 = vsub.s32 32, %v342
    %v344 = vshll.u32 %v335, %v342
    %v345 = vshrl.u32 %v327, %v343
    %v346 = vor.u32 %v344, %v345
    %v347 = vsub.s32 4294967266, %v342
    %v348 = vadd.s32 %v347, 127
    %v349 = vshll.u32 %v348, 23
    %v350 = vor.u32 4788187, %v349
    %v351 = vand.u32 2147483647, %v350
    %v353 = vcvt.s32.f32 %v346
    %v354 = vmul.f32 %v353, %v351
    %v355 = vxor.u32 %v354, 2147483648
    %v356 = vsel %vm273, %v355, %v354
    %v357 = vsub.s32 4, %v333
    %v358 = vsel %vm273, %v357, %v333
    %v359 = vsel %vm272, %v61, %v356
    %v360 = vsel %vm272, 0, %v358
    %v361 = vcosq.f32.pop %v359
    %v362 = vsinq.f32.pop %v359
    %vm363 = vweird.f32 %v61
    %v364 = vand.u32 %v360, 3
    %vm365 = vcmp.lt.s32.totalorder %v364, 2
    %vm366 = vcmp.eq.s32.totalorder %v364, 0
    %v367 = vxor.u32 %v362, 2147483648
    %v368 = vsel %vm366, %v361, %v367
    %vm369 = vcmp.eq.s32.totalorder %v364, 2
    %v370 = vxor.u32 %v361, 2147483648
    %v371 = vsel %vm369, %v370, %v362
    %v372 = vsel %vm365, %v368, %v371
    %v373 = vsel %vm363, nan, %v372
    %v374 = vand.u32 2147483647, %v62
    %vm375 = vcmp.le.f32.partialorder %v374, 0.7853982
    %vm376 = vcmp.lt.s32.totalorder %v62, 0
    %v377 = vand.u32 %v62, 2139095040
    %v378 = vshrl.u32 %v377, 23
    %v379 = vsub.s32 %v378, 127
    %v380 = vand.u32 2147483647, %v62
    %v381 = vand.u32 %v380, 8388607
    %v382 = vor.u32 %v381, 8388608
    %v383 = vsub.s32 0, %v382
    %v384 = vadd.s32 %v379, 1
    %vm385 = vcmp.gt.s32.totalorder %v384, 0
    %v386 = vsel %vm385, %v384, 0
    %v387 = vshrl.u32 %v386, 5
    %v388 = vand.u32 %v386, 31
    %v389 = vsub.s32 32, %v388
    %v390 = vshrl.u32 683565275, %v389
    %v391 = vshll.u32 683565275, %v388
    %v392 = vshrl.u32 2475754826, %v389
    %v393 = vor.u32 %v391, %v392
    %v394 = vshll.u32 2475754826, %v388
    %v395 = vshrl.u32 2131351028, %v389
    %v396 = vor.u32 %v394, %v395
    %v397 = vshll.u32 2131351028, %v388
    %v398 = vshrl.u32 2102212464, %v389
    %v399 = vor.u32 %v397, %v398
    %v400 = vshll.u32 2102212464, %v388
    %v401 = vshrl.u32 920167782, %v389
    %v402 = vor.u32 %v400, %v401
    %v403 = vshll.u32 920167782, %v388
    %v404 = vshrl.u32 1326507024, %v389
    %v405 = vor.u32 %v403, %v404
    %vm406 = vcmp.lt.s32.totalorder %v387, 1
    %vm407 = vcmp.lt.s32.totalorder %v387, 2
    %vm408 = vcmp.lt.s32.totalorder %v387, 3
    %vm409 = vcmp.lt.s32.totalorder %v387, 4
    %v410 = vsel %vm406, %v390, %v393
    %v411 = vsel %vm409, %v399, 2102212464
    %v412 = vsel %vm408, %v396, %v411
    %v413 = vsel %vm407, %v410, %v412
    %v414 = vsel %vm406, %v393, %v396
    %v415 = vsel %vm409, %v402, 920167782
    %v416 = vsel %vm408, %v399, %v415
    %v417 = vsel %vm407, %v414, %v416
    %v418 = vsel %vm406, %v396, %v399
    %v419 = vsel %vm409, %v405, 1326507024
    %v420 = vsel %vm408, %v402, %v419
    %v421 = vsel %vm407, %v418, %v420
    %v422 = vshll.u32 %v382, 8
    %v423 = vmul.u32.u64.compose %v422, %v421
    %v424 = vextract.low.u32 %v423
    %v425 = vextract.high.u32 %v423
    %v426 = vmul.u32.u64.compose %v422, %v417
    %v427 = vextract.low.u32 %v426
    %v428 = vextract.high.u32 %v426
    %v429 = vmul.u32 %v422, %v413
    %v430 = vadd.s32 %v425, %v427
    %vm431 = vc.u32 %v425, %v427
    %v432 = vadd.s32 %v428, 1
    %v433 = vsel %vm431, %v432, %v428
    %v434 = vadd.s32 %v429, %v433
    %v435 = vadd.s32 %v434, 536870912
    %v436 = vshrl.u32 %v435, 30
    %v437 = vshll.u32 %v436, 30
    %v438 = vsub.s32 %v434, %v437
    %vm439 = vcmp.lt.s32.totalorder %v438, 0
    %v440 = vsub.s32 0, %v438
    %v441 = vsel %vm439, %v440, %v438
    %v442 = vclz %v441
    %v443 = vsub.s32 %v442, 2
    %vm444 = vcmp.gt.s32.totalorder 0, %v443
    %v445 = vsel %vm444, 0, %v443
    %v446 = vsub.s32 32, %v445
    %v447 = vshll.u32 %v438, %v445
    %v448 = vshrl.u32 %v430, %v446
    %v449 = vor.u32 %v447, %v448
    %v450 = vsub.s32 4294967266, %v445
    %v451 = vadd.s32 %v450, 127
    %v452 = vshll.u32 %v451, 23
    %v453 = vor.u32 4788187, %v452
    %v454 = vand.u32 2147483647, %v453
    %v456 = vcvt.s32.f32 %v449
    %v457 = vmul.f32 %v456, %v454
    %v458 = vxor.u32 %v457, 2147483648
    %v459 = vsel %vm376, %v458, %v457
    %v460 = vsub.s32 4, %v436
    %v461 = vsel %vm376, %v460, %v436
    %v462 = vsel %vm375, %v62, %v459
    %v463 = vsel %vm375, 0, %v461
    %v464 = vcosq.f32.pop %v462
    %v465 = vsinq.f32.pop %v462
    %vm466 = vweird.f32 %v62
    %v467 = vand.u32 %v463, 3
    %vm468 = vcmp.lt.s32.totalorder %v467, 2
    %vm469 = vcmp.eq.s32.totalorder %v467, 0
    %v470 = vxor.u32 %v465, 2147483648
    %v471 = vsel %vm469, %v464, %v470
    %vm472 = vcmp.eq.s32.totalorder %v467, 2
    %v473 = vxor.u32 %v464, 2147483648
    %v474 = vsel %vm472, %v473, %v465
    %v475 = vsel %vm468, %v471, %v474
    %v476 = vsel %vm466, nan, %v475
    %v477 = vld [vmem:[%s3] sm:$0xff]
    %v478 = vld [vmem:[%s3 + $0x8] sm:$0xff]
    %v479 = vld [vmem:[%s3 + $0x10] sm:$0xff]
    %v480 = vld [vmem:[%s3 + $0x18] sm:$0xff]
    %vm481 = vcmask 261120
    %v483 = vsel %vm481, %v477, 0
    %v486 = vsel %vm481, %v478, 0
    %v489 = vsel %vm481, %v479, 0
    %v492 = vsel %vm481, %v480, 0
    %494 = vmatprep.subr.mxu0 0.0
    %495 = vmatpush1.msra.mxu0 %v166
    %496 = vmatprep.subr.mxu0 0.0
    %497 = vmatpush1.msra.mxu0 %v270
    %498 = vmatprep.subr.mxu0 0.0
    %499 = vmatpush1.msra.mxu0 %v373
    %500 = vmatprep.subr.mxu0 0.0
    %501 = vmatpush1.msra.mxu0 %v476
    %502 = vmatprep.subr.mxu0 0.0
    %503 = vmatpush1.msra.mxu0 0.0
    %504 = vmatprep.subr.mxu0 0.0
    %505 = vmatpush1.msra.mxu0 0.0
    %506 = vmatprep.subr.mxu0 0.0
    %507 = vmatpush1.msra.mxu0 0.0
    %508 = vmatprep.subr.mxu0 0.0
    %509 = vmatpush1.msra.mxu0 0.0
    %510 = vmatprep.subr.mxu0 0.0
    %511 = vmatpush1.msra.mxu0 0.0
    %512 = vmatprep.subr.mxu0 0.0
    %513 = vmatpush1.msra.mxu0 0.0
    %514 = vmatprep.subr.mxu0 0.0
    %515 = vmatpush1.msra.mxu0 0.0
    %516 = vmatprep.subr.mxu0 0.0
    %517 = vmatpush1.msra.mxu0 0.0
    %518 = vmatprep.subr.mxu0 0.0
    %519 = vmatpush1.msra.mxu0 0.0
    %520 = vmatprep.subr.mxu0 0.0
    %521 = vmatpush1.msra.mxu0 0.0
    %522 = vmatprep.subr.mxu0 0.0
    %523 = vmatpush1.msra.mxu0 0.0
    %524 = vmatprep.subr.mxu0 0.0
    %525 = vmatpush1.msra.mxu0 0.0
    %526 = vmatprep.subr.mxu0 0.0
    %527 = vmatpush1.msra.mxu0 0.0
    %528 = vmatprep.subr.mxu0 0.0
    %529 = vmatpush1.msra.mxu0 0.0
    %530 = vmatprep.subr.mxu0 0.0
    %531 = vmatpush1.msra.mxu0 0.0
    %532 = vmatprep.subr.mxu0 0.0
    %533 = vmatpush1.msra.mxu0 0.0
    %534 = vmatprep.subr.mxu0 0.0
    %535 = vmatpush1.msra.mxu0 0.0
    %536 = vmatprep.subr.mxu0 0.0
    %537 = vmatpush1.msra.mxu0 0.0
    %538 = vmatprep.subr.mxu0 0.0
    %539 = vmatpush1.msra.mxu0 0.0
    %540 = vmatprep.subr.mxu0 0.0
    %541 = vmatpush1.msra.mxu0 0.0
    %542 = vmatprep.subr.mxu0 0.0
    %543 = vmatpush1.msra.mxu0 0.0
    %544 = vmatprep.subr.mxu0 0.0
    %545 = vmatpush1.msra.mxu0 0.0
    %546 = vmatprep.subr.mxu0 0.0
    %547 = vmatpush1.msra.mxu0 0.0
    %548 = vmatprep.subr.mxu0 0.0
    %549 = vmatpush1.msra.mxu0 0.0
    %550 = vmatprep.subr.mxu0 0.0
    %551 = vmatpush1.msra.mxu0 0.0
    %552 = vmatprep.subr.mxu0 0.0
    %553 = vmatpush1.msra.mxu0 0.0
    %554 = vmatprep.subr.mxu0 0.0
    %555 = vmatpush1.msra.mxu0 0.0
    %556 = vmatprep.subr.mxu0 0.0
    %557 = vmatpush1.msra.mxu0 0.0
    %558 = vmatprep.mubr.f32.mxu0 0.0
    %559 = vmatmul.mubr.f32.gmra.mrb[0].mxu0 %v483
    %v560 = vpop.f32.mrb[0].mxu0
    %v561 = vadd.f32 0.0, %v560
    %v562 = vpop.f32.mrb[0].mxu0
    %563 = vmatprep.mubr.f32.mxu0 0.0
    %564 = vmatmul.mubr.f32.gmra.mrb[0].mxu0 %v486
    %v565 = vpop.f32.mrb[0].mxu0
    %v566 = vadd.f32 0.0, %v565
    %v567 = vpop.f32.mrb[0].mxu0
    %568 = vmatprep.mubr.f32.mxu0 0.0
    %569 = vmatmul.mubr.f32.gmra.mrb[0].mxu0 %v489
    %v570 = vpop.f32.mrb[0].mxu0
    %v571 = vadd.f32 0.0, %v570
    %v572 = vpop.f32.mrb[0].mxu0
    %573 = vmatprep.mubr.f32.mxu0 0.0
    %574 = vmatmul.mubr.f32.gmra.mrb[0].mxu0 %v492
    %v575 = vpop.f32.mrb[0].mxu0
    %v576 = vadd.f32 0.0, %v575
    %v577 = vpop.f32.mrb[0].mxu0
    %578 = vdwg.mxu0
    %v579 = vld [vmem:[%s0] sm:$0xff]
    %v580 = vld [vmem:[%s0 + $0x8] sm:$0xff]
    %v581 = vld [vmem:[%s0 + $0x10] sm:$0xff]
    %v582 = vld [vmem:[%s0 + $0x18] sm:$0xff]
    %v583 = vld [vmem:[%s0 + $0x20] sm:$0xff]
    %v584 = vld [vmem:[%s2] sm:$0xff]
    %v585 = vld [vmem:[%s2 + $0x8] sm:$0xff]
    %v586 = vld [vmem:[%s2 + $0x10] sm:$0xff]
    %v587 = vld [vmem:[%s2 + $0x18] sm:$0xff]
    %589 = vset.pattern.permute.xlu0 0
    %590 = vperm.xlu0 %589, %v561
    %v591 = vpop.permute.xlu0 %590
    %594 = vset.pattern.permute.xlu0 0
    %595 = vperm.xlu0 %594, %v566
    %v596 = vpop.permute.xlu0 %595
    %599 = vset.pattern.permute.xlu0 0
    %600 = vperm.xlu0 %599, %v571
    %v601 = vpop.permute.xlu0 %600
    %604 = vset.pattern.permute.xlu0 0
    %605 = vperm.xlu0 %604, %v576
    %v606 = vpop.permute.xlu0 %605
    %vm608 = vcmask 130048
    %v610 = vsel %vm608, %v584, 0
    %v613 = vsel %vm608, %v585, 0
    %v616 = vsel %vm608, %v586, 0
    %v619 = vsel %vm608, %v587, 0
    %621 = vmatprep.subr.mxu0 0.0
    %622 = vmatpush1.msra.mxu0 %v579
    %623 = vmatprep.subr.mxu0 0.0
    %624 = vmatpush1.msra.mxu0 %v580
    %625 = vmatprep.subr.mxu0 0.0
    %626 = vmatpush1.msra.mxu0 0.0
    %627 = vmatprep.subr.mxu0 0.0
    %628 = vmatpush1.msra.mxu0 0.0
    %629 = vmatprep.subr.mxu0 0.0
    %630 = vmatpush1.msra.mxu0 0.0
    %631 = vmatprep.subr.mxu0 0.0
    %632 = vmatpush1.msra.mxu0 0.0
    %633 = vmatprep.subr.mxu0 0.0
    %634 = vmatpush1.msra.mxu0 0.0
    %635 = vmatprep.subr.mxu0 0.0
    %636 = vmatpush1.msra.mxu0 0.0
    %637 = vmatprep.subr.mxu0 0.0
    %638 = vmatpush1.msra.mxu0 0.0
    %639 = vmatprep.subr.mxu0 0.0
    %640 = vmatpush1.msra.mxu0 0.0
    %641 = vmatprep.subr.mxu0 0.0
    %642 = vmatpush1.msra.mxu0 0.0
    %643 = vmatprep.subr.mxu0 0.0
    %644 = vmatpush1.msra.mxu0 0.0
    %645 = vmatprep.subr.mxu0 0.0
    %646 = vmatpush1.msra.mxu0 0.0
    %647 = vmatprep.subr.mxu0 0.0
    %648 = vmatpush1.msra.mxu0 0.0
    %649 = vmatprep.subr.mxu0 0.0
    %650 = vmatpush1.msra.mxu0 0.0
    %651 = vmatprep.subr.mxu0 0.0
    %652 = vmatpush1.msra.mxu0 0.0
    %653 = vmatprep.subr.mxu0 0.0
    %654 = vmatpush1.msra.mxu0 0.0
    %655 = vmatprep.subr.mxu0 0.0
    %656 = vmatpush1.msra.mxu0 0.0
    %657 = vmatprep.subr.mxu0 0.0
    %658 = vmatpush1.msra.mxu0 0.0
    %659 = vmatprep.subr.mxu0 0.0
    %660 = vmatpush1.msra.mxu0 0.0
    %661 = vmatprep.subr.mxu0 0.0
    %662 = vmatpush1.msra.mxu0 0.0
    %663 = vmatprep.subr.mxu0 0.0
    %664 = vmatpush1.msra.mxu0 0.0
    %665 = vmatprep.subr.mxu0 0.0
    %666 = vmatpush1.msra.mxu0 0.0
    %667 = vmatprep.subr.mxu0 0.0
    %668 = vmatpush1.msra.mxu0 0.0
    %669 = vmatprep.subr.mxu0 0.0
    %670 = vmatpush1.msra.mxu0 0.0
    %671 = vmatprep.subr.mxu0 0.0
    %672 = vmatpush1.msra.mxu0 0.0
    %673 = vmatprep.subr.mxu0 0.0
    %674 = vmatpush1.msra.mxu0 0.0
    %675 = vmatprep.subr.mxu0 0.0
    %676 = vmatpush1.msra.mxu0 0.0
    %677 = vmatprep.subr.mxu0 0.0
    %678 = vmatpush1.msra.mxu0 0.0
    %679 = vmatprep.subr.mxu0 0.0
    %680 = vmatpush1.msra.mxu0 0.0
    %681 = vmatprep.subr.mxu0 0.0
    %682 = vmatpush1.msra.mxu0 0.0
    %683 = vmatprep.subr.mxu0 0.0
    %684 = vmatpush1.msra.mxu0 0.0
    %685 = vmatprep.mubr.f32.mxu0 0.0
    %686 = vmatmul.mubr.f32.gmra.mrb[0].mxu0 %v610
    %v687 = vpop.f32.mrb[0].mxu0
    %v688 = vadd.f32 %v591, %v687
    %v689 = vpop.f32.mrb[0].mxu0
    %690 = vmatprep.mubr.f32.mxu0 0.0
    %691 = vmatmul.mubr.f32.gmra.mrb[0].mxu0 %v613
    %v692 = vpop.f32.mrb[0].mxu0
    %v693 = vadd.f32 %v596, %v692
    %v694 = vpop.f32.mrb[0].mxu0
    %695 = vmatprep.mubr.f32.mxu0 0.0
    %696 = vmatmul.mubr.f32.gmra.mrb[0].mxu0 %v616
    %v697 = vpop.f32.mrb[0].mxu0
    %v698 = vadd.f32 %v601, %v697
    %v699 = vpop.f32.mrb[0].mxu0
    %700 = vmatprep.mubr.f32.mxu0 0.0
    %701 = vmatmul.mubr.f32.gmra.mrb[0].mxu0 %v619
    %v702 = vpop.f32.mrb[0].mxu0
    %v703 = vadd.f32 %v606, %v702
    %v704 = vpop.f32.mrb[0].mxu0
    %705 = vdwg.mxu0
    %707 = vset.pattern.permute.xlu0 0
    %708 = vperm.xlu0 %707, %v31
    %v709 = vpop.permute.xlu0 %708
    %712 = vset.pattern.permute.xlu0 0
    %713 = vperm.xlu0 %712, %v32
    %v714 = vpop.permute.xlu0 %713
    %717 = vset.pattern.permute.xlu0 0
    %718 = vperm.xlu0 %717, %v33
    %v719 = vpop.permute.xlu0 %718
    %722 = vset.pattern.permute.xlu0 0
    %723 = vperm.xlu0 %722, %v34
    %v724 = vpop.permute.xlu0 %723
    %v726 = vadd.f32 %v688, %v709
    %v727 = vadd.f32 %v693, %v714
    %v728 = vadd.f32 %v698, %v719
    %v729 = vadd.f32 %v703, %v724
    %v730 = vxor.u32 %v726, 2147483648
    %v731 = vxor.u32 %v727, 2147483648
    %v732 = vxor.u32 %v728, 2147483648
    %v733 = vxor.u32 %v729, 2147483648
    %v734 = vmul.f32 %v730, 1.442695
    %v735 = vpow.pop %v734
    %v736 = vmul.f32 %v731, 1.442695
    %v737 = vpow.pop %v736
    %v738 = vmul.f32 %v732, 1.442695
    %v739 = vpow.pop %v738
    %v740 = vmul.f32 %v733, 1.442695
    %v741 = vpow.pop %v740
    %v742 = vadd.f32 %v735, 1.0
    %v743 = vadd.f32 %v737, 1.0
    %v744 = vadd.f32 %v739, 1.0
    %v745 = vadd.f32 %v741, 1.0
    %v746 = vrcp.pop %v742
    %v747 = vmul.f32 1.0, %v746
    %v748 = vrcp.pop %v743
    %v749 = vmul.f32 1.0, %v748
    %v750 = vrcp.pop %v744
    %v751 = vmul.f32 1.0, %v750
    %v752 = vrcp.pop %v745
    %v753 = vmul.f32 1.0, %v752
    %v754 = vmul.f32 %v726, %v747
    %v755 = vmul.f32 %v727, %v749
    %v756 = vmul.f32 %v728, %v751
    %v757 = vmul.f32 %v729, %v753
    %v758 = vld [vmem:[%s4] sm:$0xff]
    %v759 = vld [vmem:[%s4 + $0x8] sm:$0xff]
    %v760 = vld [vmem:[%s4 + $0x10] sm:$0xff]
    %v761 = vld [vmem:[%s4 + $0x18] sm:$0xff]
    %763 = vset.pattern.permute.xlu0 0
    %764 = vperm.xlu0 %763, %v35
    %v765 = vpop.permute.xlu0 %764
    %768 = vset.pattern.permute.xlu0 0
    %769 = vperm.xlu0 %768, %v36
    %v770 = vpop.permute.xlu0 %769
    %773 = vset.pattern.permute.xlu0 0
    %774 = vperm.xlu0 %773, %v37
    %v775 = vpop.permute.xlu0 %774
    %778 = vset.pattern.permute.xlu0 0
    %779 = vperm.xlu0 %778, %v38
    %v780 = vpop.permute.xlu0 %779
    %v783 = vsel %vm481, %v758, 0
    %v786 = vsel %vm481, %v759, 0
    %v789 = vsel %vm481, %v760, 0
    %v792 = vsel %vm481, %v761, 0
    %794 = vmatprep.subr.mxu0 0.0
    %795 = vmatpush1.msra.mxu0 %v754
    %796 = vmatprep.subr.mxu0 0.0
    %797 = vmatpush1.msra.mxu0 %v755
    %798 = vmatprep.subr.mxu0 0.0
    %799 = vmatpush1.msra.mxu0 %v756
    %800 = vmatprep.subr.mxu0 0.0
    %801 = vmatpush1.msra.mxu0 %v757
    %802 = vmatprep.subr.mxu0 0.0
    %803 = vmatpush1.msra.mxu0 0.0
    %804 = vmatprep.subr.mxu0 0.0
    %805 = vmatpush1.msra.mxu0 0.0
    %806 = vmatprep.subr.mxu0 0.0
    %807 = vmatpush1.msra.mxu0 0.0
    %808 = vmatprep.subr.mxu0 0.0
    %809 = vmatpush1.msra.mxu0 0.0
    %810 = vmatprep.subr.mxu0 0.0
    %811 = vmatpush1.msra.mxu0 0.0
    %812 = vmatprep.subr.mxu0 0.0
    %813 = vmatpush1.msra.mxu0 0.0
    %814 = vmatprep.subr.mxu0 0.0
    %815 = vmatpush1.msra.mxu0 0.0
    %816 = vmatprep.subr.mxu0 0.0
    %817 = vmatpush1.msra.mxu0 0.0
    %818 = vmatprep.subr.mxu0 0.0
    %819 = vmatpush1.msra.mxu0 0.0
    %820 = vmatprep.subr.mxu0 0.0
    %821 = vmatpush1.msra.mxu0 0.0
    %822 = vmatprep.subr.mxu0 0.0
    %823 = vmatpush1.msra.mxu0 0.0
    %824 = vmatprep.subr.mxu0 0.0
    %825 = vmatpush1.msra.mxu0 0.0
    %826 = vmatprep.subr.mxu0 0.0
    %827 = vmatpush1.msra.mxu0 0.0
    %828 = vmatprep.subr.mxu0 0.0
    %829 = vmatpush1.msra.mxu0 0.0
    %830 = vmatprep.subr.mxu0 0.0
    %831 = vmatpush1.msra.mxu0 0.0
    %832 = vmatprep.subr.mxu0 0.0
    %833 = vmatpush1.msra.mxu0 0.0
    %834 = vmatprep.subr.mxu0 0.0
    %835 = vmatpush1.msra.mxu0 0.0
    %836 = vmatprep.subr.mxu0 0.0
    %837 = vmatpush1.msra.mxu0 0.0
    %838 = vmatprep.subr.mxu0 0.0
    %839 = vmatpush1.msra.mxu0 0.0
    %840 = vmatprep.subr.mxu0 0.0
    %841 = vmatpush1.msra.mxu0 0.0
    %842 = vmatprep.subr.mxu0 0.0
    %843 = vmatpush1.msra.mxu0 0.0
    %844 = vmatprep.subr.mxu0 0.0
    %845 = vmatpush1.msra.mxu0 0.0
    %846 = vmatprep.subr.mxu0 0.0
    %847 = vmatpush1.msra.mxu0 0.0
    %848 = vmatprep.subr.mxu0 0.0
    %849 = vmatpush1.msra.mxu0 0.0
    %850 = vmatprep.subr.mxu0 0.0
    %851 = vmatpush1.msra.mxu0 0.0
    %852 = vmatprep.subr.mxu0 0.0
    %853 = vmatpush1.msra.mxu0 0.0
    %854 = vmatprep.subr.mxu0 0.0
    %855 = vmatpush1.msra.mxu0 0.0
    %856 = vmatprep.subr.mxu0 0.0
    %857 = vmatpush1.msra.mxu0 0.0
    %858 = vmatprep.mubr.f32.mxu0 0.0
    %859 = vmatmul.mubr.f32.gmra.mrb[0].mxu0 %v783
    %v860 = vpop.f32.mrb[0].mxu0
    %v861 = vadd.f32 %v765, %v860
    %v862 = vpop.f32.mrb[0].mxu0
    %863 = vmatprep.mubr.f32.mxu0 0.0
    %864 = vmatmul.mubr.f32.gmra.mrb[0].mxu0 %v786
    %v865 = vpop.f32.mrb[0].mxu0
    %v866 = vadd.f32 %v770, %v865
    %v867 = vpop.f32.mrb[0].mxu0
    %868 = vmatprep.mubr.f32.mxu0 0.0
    %869 = vmatmul.mubr.f32.gmra.mrb[0].mxu0 %v789
    %v870 = vpop.f32.mrb[0].mxu0
    %v871 = vadd.f32 %v775, %v870
    %v872 = vpop.f32.mrb[0].mxu0
    %873 = vmatprep.mubr.f32.mxu0 0.0
    %874 = vmatmul.mubr.f32.gmra.mrb[0].mxu0 %v792
    %v875 = vpop.f32.mrb[0].mxu0
    %v876 = vadd.f32 %v780, %v875
    %v877 = vpop.f32.mrb[0].mxu0
    %878 = vdwg.mxu0
    %v879 = vxor.u32 %v861, 2147483648
    %v880 = vxor.u32 %v866, 2147483648
    %v881 = vxor.u32 %v871, 2147483648
    %v882 = vxor.u32 %v876, 2147483648
    %v883 = vmul.f32 %v879, 1.442695
    %v884 = vpow.pop %v883
    %v885 = vmul.f32 %v880, 1.442695
    %v886 = vpow.pop %v885
    %v887 = vmul.f32 %v881, 1.442695
    %v888 = vpow.pop %v887
    %v889 = vmul.f32 %v882, 1.442695
    %v890 = vpow.pop %v889
    %v891 = vadd.f32 %v884, 1.0
    %v892 = vadd.f32 %v886, 1.0
    %v893 = vadd.f32 %v888, 1.0
    %v894 = vadd.f32 %v890, 1.0
    %v895 = vrcp.pop %v891
    %v896 = vmul.f32 1.0, %v895
    %v897 = vrcp.pop %v892
    %v898 = vmul.f32 1.0, %v897
    %v899 = vrcp.pop %v893
    %v900 = vmul.f32 1.0, %v899
    %v901 = vrcp.pop %v894
    %v902 = vmul.f32 1.0, %v901
    %v903 = vmul.f32 %v861, %v896
    %v904 = vmul.f32 %v866, %v898
    %v905 = vmul.f32 %v871, %v900
    %v906 = vmul.f32 %v876, %v902
    %v907 = vld [vmem:[%s5] sm:$0xff]
    %v908 = vld [vmem:[%s5 + $0x8] sm:$0xff]
    %v909 = vld [vmem:[%s5 + $0x10] sm:$0xff]
    %v910 = vld [vmem:[%s5 + $0x18] sm:$0xff]
    %v911 = vld [vmem:[%s5 + $0x20] sm:$0xff]
    %v912 = vld [vmem:[%s5 + $0x28] sm:$0xff]
    %v913 = vld [vmem:[%s5 + $0x30] sm:$0xff]
    %v914 = vld [vmem:[%s5 + $0x38] sm:$0xff]
    %vm915 = vcmask 392192
    %v917 = vsel %vm915, %v907, 0
    %v920 = vsel %vm915, %v908, 0
    %v923 = vsel %vm915, %v909, 0
    %v926 = vsel %vm915, %v910, 0
    %v929 = vsel %vm915, %v911, 0
    %v932 = vsel %vm915, %v912, 0
    %v935 = vsel %vm915, %v913, 0
    %v938 = vsel %vm915, %v914, 0
    %940 = vmatprep.subr.mxu0 0.0
    %941 = vmatpush1.msra.mxu0 %v903
    %942 = vmatprep.subr.mxu0 0.0
    %943 = vmatpush1.msra.mxu0 %v904
    %944 = vmatprep.subr.mxu0 0.0
    %945 = vmatpush1.msra.mxu0 %v905
    %946 = vmatprep.subr.mxu0 0.0
    %947 = vmatpush1.msra.mxu0 %v906
    %948 = vmatprep.subr.mxu0 0.0
    %949 = vmatpush1.msra.mxu0 %v581
    %950 = vmatprep.subr.mxu0 0.0
    %951 = vmatpush1.msra.mxu0 %v582
    %952 = vmatprep.subr.mxu0 0.0
    %953 = vmatpush1.msra.mxu0 0.0
    %954 = vmatprep.subr.mxu0 0.0
    %955 = vmatpush1.msra.mxu0 0.0
    %956 = vmatprep.subr.mxu0 0.0
    %957 = vmatpush1.msra.mxu0 0.0
    %958 = vmatprep.subr.mxu0 0.0
    %959 = vmatpush1.msra.mxu0 0.0
    %960 = vmatprep.subr.mxu0 0.0
    %961 = vmatpush1.msra.mxu0 0.0
    %962 = vmatprep.subr.mxu0 0.0
    %963 = vmatpush1.msra.mxu0 0.0
    %964 = vmatprep.subr.mxu0 0.0
    %965 = vmatpush1.msra.mxu0 0.0
    %966 = vmatprep.subr.mxu0 0.0
    %967 = vmatpush1.msra.mxu0 0.0
    %968 = vmatprep.subr.mxu0 0.0
    %969 = vmatpush1.msra.mxu0 0.0
    %970 = vmatprep.subr.mxu0 0.0
    %971 = vmatpush1.msra.mxu0 0.0
    %972 = vmatprep.subr.mxu0 0.0
    %973 = vmatpush1.msra.mxu0 0.0
    %974 = vmatprep.subr.mxu0 0.0
    %975 = vmatpush1.msra.mxu0 0.0
    %976 = vmatprep.subr.mxu0 0.0
    %977 = vmatpush1.msra.mxu0 0.0
    %978 = vmatprep.subr.mxu0 0.0
    %979 = vmatpush1.msra.mxu0 0.0
    %980 = vmatprep.subr.mxu0 0.0
    %981 = vmatpush1.msra.mxu0 0.0
    %982 = vmatprep.subr.mxu0 0.0
    %983 = vmatpush1.msra.mxu0 0.0
    %984 = vmatprep.subr.mxu0 0.0
    %985 = vmatpush1.msra.mxu0 0.0
    %986 = vmatprep.subr.mxu0 0.0
    %987 = vmatpush1.msra.mxu0 0.0
    %988 = vmatprep.subr.mxu0 0.0
    %989 = vmatpush1.msra.mxu0 0.0
    %990 = vmatprep.subr.mxu0 0.0
    %991 = vmatpush1.msra.mxu0 0.0
    %992 = vmatprep.subr.mxu0 0.0
    %993 = vmatpush1.msra.mxu0 0.0
    %994 = vmatprep.subr.mxu0 0.0
    %995 = vmatpush1.msra.mxu0 0.0
    %996 = vmatprep.subr.mxu0 0.0
    %997 = vmatpush1.msra.mxu0 0.0
    %998 = vmatprep.subr.mxu0 0.0
    %999 = vmatpush1.msra.mxu0 0.0
    %1000 = vmatprep.subr.mxu0 0.0
    %1001 = vmatpush1.msra.mxu0 0.0
    %1002 = vmatprep.subr.mxu0 0.0
    %1003 = vmatpush1.msra.mxu0 0.0
    %1004 = vmatprep.mubr.f32.mxu0 0.0
    %1005 = vmatmul.mubr.f32.gmra.mrb[0].mxu0 %v917
    %v1006 = vpop.f32.mrb[0].mxu0
    %v1007 = vadd.f32 0.0, %v1006
    %v1008 = vpop.f32.mrb[0].mxu0
    %1009 = vmatprep.mubr.f32.mxu0 0.0
    %1010 = vmatmul.mubr.f32.gmra.mrb[0].mxu0 %v920
    %v1011 = vpop.f32.mrb[0].mxu0
    %v1012 = vadd.f32 0.0, %v1011
    %v1013 = vpop.f32.mrb[0].mxu0
    %1014 = vmatprep.mubr.f32.mxu0 0.0
    %1015 = vmatmul.mubr.f32.gmra.mrb[0].mxu0 %v923
    %v1016 = vpop.f32.mrb[0].mxu0
    %v1017 = vadd.f32 0.0, %v1016
    %v1018 = vpop.f32.mrb[0].mxu0
    %1019 = vmatprep.mubr.f32.mxu0 0.0
    %1020 = vmatmul.mubr.f32.gmra.mrb[0].mxu0 %v926
    %v1021 = vpop.f32.mrb[0].mxu0
    %v1022 = vadd.f32 0.0, %v1021
    %v1023 = vpop.f32.mrb[0].mxu0
    %1024 = vmatprep.mubr.f32.mxu0 0.0
    %1025 = vmatmul.mubr.f32.gmra.mrb[0].mxu0 %v929
    %v1026 = vpop.f32.mrb[0].mxu0
    %v1027 = vadd.f32 0.0, %v1026
    %v1028 = vpop.f32.mrb[0].mxu0
    %1029 = vmatprep.mubr.f32.mxu0 0.0
    %1030 = vmatmul.mubr.f32.gmra.mrb[0].mxu0 %v932
    %v1031 = vpop.f32.mrb[0].mxu0
    %v1032 = vadd.f32 0.0, %v1031
    %v1033 = vpop.f32.mrb[0].mxu0
    %1034 = vmatprep.mubr.f32.mxu0 0.0
    %1035 = vmatmul.mubr.f32.gmra.mrb[0].mxu0 %v935
    %v1036 = vpop.f32.mrb[0].mxu0
    %v1037 = vadd.f32 0.0, %v1036
    %v1038 = vpop.f32.mrb[0].mxu0
    %1039 = vmatprep.mubr.f32.mxu0 0.0
    %1040 = vmatmul.mubr.f32.gmra.mrb[0].mxu0 %v938
    %v1041 = vpop.f32.mrb[0].mxu0
    %v1042 = vadd.f32 0.0, %v1041
    %v1043 = vpop.f32.mrb[0].mxu0
    %1044 = vdwg.mxu0
    %1046 = vset.pattern.permute.xlu0 0
    %1047 = vperm.xlu0 %1046, %v39
    %v1048 = vpop.permute.xlu0 %1047
    %1051 = vset.pattern.permute.xlu0 0
    %1052 = vperm.xlu0 %1051, %v40
    %v1053 = vpop.permute.xlu0 %1052
    %v1055 = vadd.f32 %v1007, %v1048
    %v1056 = vadd.f32 %v1012, %v1053
    %v1057 = vxor.u32 %v1055, 2147483648
    %v1058 = vxor.u32 %v1056, 2147483648
    %v1059 = vmul.f32 %v1057, 1.442695
    %v1060 = vpow.pop %v1059
    %v1061 = vmul.f32 %v1058, 1.442695
    %v1062 = vpow.pop %v1061
    %v1063 = vadd.f32 %v1060, 1.0
    %v1064 = vadd.f32 %v1062, 1.0
    %v1065 = vrcp.pop %v1063
    %v1066 = vmul.f32 1.0, %v1065
    %v1067 = vrcp.pop %v1064
    %v1068 = vmul.f32 1.0, %v1067
    %1070 = vset.pattern.permute.xlu0 0
    %1071 = vperm.xlu0 %1070, %v41
    %v1072 = vpop.permute.xlu0 %1071
    %1075 = vset.pattern.permute.xlu0 0
    %1076 = vperm.xlu0 %1075, %v42
    %v1077 = vpop.permute.xlu0 %1076
    %v1079 = vadd.f32 %v1017, %v1072
    %v1080 = vadd.f32 %v1022, %v1077
    %v1081 = vxor.u32 %v1079, 2147483648
    %v1082 = vxor.u32 %v1080, 2147483648
    %v1083 = vmul.f32 %v1081, 1.442695
    %v1084 = vpow.pop %v1083
    %v1085 = vmul.f32 %v1082, 1.442695
    %v1086 = vpow.pop %v1085
    %v1087 = vadd.f32 %v1084, 1.0
    %v1088 = vadd.f32 %v1086, 1.0
    %v1089 = vrcp.pop %v1087
    %v1090 = vmul.f32 1.0, %v1089
    %v1091 = vrcp.pop %v1088
    %v1092 = vmul.f32 1.0, %v1091
    %1094 = vset.pattern.permute.xlu0 0
    %1095 = vperm.xlu0 %1094, %v43
    %v1096 = vpop.permute.xlu0 %1095
    %1099 = vset.pattern.permute.xlu0 0
    %1100 = vperm.xlu0 %1099, %v44
    %v1101 = vpop.permute.xlu0 %1100
    %v1103 = vadd.f32 %v1027, %v1096
    %v1104 = vadd.f32 %v1032, %v1101
    %1106 = vset.pattern.permute.xlu0 0
    %1107 = vperm.xlu0 %1106, %v45
    %v1108 = vpop.permute.xlu0 %1107
    %1111 = vset.pattern.permute.xlu0 0
    %1112 = vperm.xlu0 %1111, %v46
    %v1113 = vpop.permute.xlu0 %1112
    %v1115 = vadd.f32 %v1037, %v1108
    %v1116 = vadd.f32 %v1042, %v1113
    %v1117 = vmul.f32 %v1066, %v1115
    %v1118 = vmul.f32 %v1068, %v1116
    %v1119 = vadd.f32 %v1103, %v1117
    %v1120 = vadd.f32 %v1104, %v1118
    %v1121 = vtanh.pop %v1119
    %v1122 = vtanh.pop %v1120
    %v1123 = vsub.f32 1.0, %v1090
    %v1124 = vsub.f32 1.0, %v1092
    %v1125 = vmul.f32 %v1123, %v1121
    %v1126 = vmul.f32 %v1124, %v1122
    %v1127 = vmul.f32 %v1090, %v581
    %v1128 = vmul.f32 %v1092, %v582
    %v1129 = vadd.f32 %v1125, %v1127
    %v1130 = vadd.f32 %v1126, %v1128
    %v1131 = vld [vmem:[%s6] sm:$0xff]
    %1133 = vset.pattern.permute.xlu0 0
    %1134 = vperm.xlu0 %1133, %v47
    %v1135 = vpop.permute.xlu0 %1134
    %v1138 = vsel %vm608, %v1131, 0
    %1140 = vmatprep.subr.mxu0 0.0
    %1141 = vmatpush1.msra.mxu0 %v1129
    %1142 = vmatprep.subr.mxu0 0.0
    %1143 = vmatpush1.msra.mxu0 %v1130
    %1144 = vmatprep.subr.mxu0 0.0
    %1145 = vmatpush1.msra.mxu0 0.0
    %1146 = vmatprep.subr.mxu0 0.0
    %1147 = vmatpush1.msra.mxu0 0.0
    %1148 = vmatprep.subr.mxu0 0.0
    %1149 = vmatpush1.msra.mxu0 0.0
    %1150 = vmatprep.subr.mxu0 0.0
    %1151 = vmatpush1.msra.mxu0 0.0
    %1152 = vmatprep.subr.mxu0 0.0
    %1153 = vmatpush1.msra.mxu0 0.0
    %1154 = vmatprep.subr.mxu0 0.0
    %1155 = vmatpush1.msra.mxu0 0.0
    %1156 = vmatprep.subr.mxu0 0.0
    %1157 = vmatpush1.msra.mxu0 0.0
    %1158 = vmatprep.subr.mxu0 0.0
    %1159 = vmatpush1.msra.mxu0 0.0
    %1160 = vmatprep.subr.mxu0 0.0
    %1161 = vmatpush1.msra.mxu0 0.0
    %1162 = vmatprep.subr.mxu0 0.0
    %1163 = vmatpush1.msra.mxu0 0.0
    %1164 = vmatprep.subr.mxu0 0.0
    %1165 = vmatpush1.msra.mxu0 0.0
    %1166 = vmatprep.subr.mxu0 0.0
    %1167 = vmatpush1.msra.mxu0 0.0
    %1168 = vmatprep.subr.mxu0 0.0
    %1169 = vmatpush1.msra.mxu0 0.0
    %1170 = vmatprep.subr.mxu0 0.0
    %1171 = vmatpush1.msra.mxu0 0.0
    %1172 = vmatprep.subr.mxu0 0.0
    %1173 = vmatpush1.msra.mxu0 0.0
    %1174 = vmatprep.subr.mxu0 0.0
    %1175 = vmatpush1.msra.mxu0 0.0
    %1176 = vmatprep.subr.mxu0 0.0
    %1177 = vmatpush1.msra.mxu0 0.0
    %1178 = vmatprep.subr.mxu0 0.0
    %1179 = vmatpush1.msra.mxu0 0.0
    %1180 = vmatprep.subr.mxu0 0.0
    %1181 = vmatpush1.msra.mxu0 0.0
    %1182 = vmatprep.subr.mxu0 0.0
    %1183 = vmatpush1.msra.mxu0 0.0
    %1184 = vmatprep.subr.mxu0 0.0
    %1185 = vmatpush1.msra.mxu0 0.0
    %1186 = vmatprep.subr.mxu0 0.0
    %1187 = vmatpush1.msra.mxu0 0.0
    %1188 = vmatprep.subr.mxu0 0.0
    %1189 = vmatpush1.msra.mxu0 0.0
    %1190 = vmatprep.subr.mxu0 0.0
    %1191 = vmatpush1.msra.mxu0 0.0
    %1192 = vmatprep.subr.mxu0 0.0
    %1193 = vmatpush1.msra.mxu0 0.0
    %1194 = vmatprep.subr.mxu0 0.0
    %1195 = vmatpush1.msra.mxu0 0.0
    %1196 = vmatprep.subr.mxu0 0.0
    %1197 = vmatpush1.msra.mxu0 0.0
    %1198 = vmatprep.subr.mxu0 0.0
    %1199 = vmatpush1.msra.mxu0 0.0
    %1200 = vmatprep.subr.mxu0 0.0
    %1201 = vmatpush1.msra.mxu0 0.0
    %1202 = vmatprep.subr.mxu0 0.0
    %1203 = vmatpush1.msra.mxu0 0.0
    %1204 = vmatprep.mubr.f32.mxu0 0.0
    %1205 = vmatmul.mubr.f32.gmra.mrb[0].mxu0 %v1138
    %v1206 = vpop.f32.mrb[0].mxu0
    %v1207 = vadd.f32 %v1135, %v1206
    %v1208 = vpop.f32.mrb[0].mxu0
    %1209 = vdwg.mxu0
    %v1210 = vsub.f32 %v1207, %v583
    %1211 = vst [vmem:[#allocation3] sm:$0xff] %v1207
    %1212 = vst [vmem:[#allocation3 + $0x8] sm:$0xff] %v1129
    %1213 = vst [vmem:[#allocation3 + $0x10] sm:$0xff] %v1130
    %v1214 = vmul.f32 %v1210, %v1210
    %1215 = vst [vmem:[#allocation3 + $0x18] sm:$0xff] %v1214
    // Predicated region
    $region34: #{tpu_custom_call.1} parent=1 // pred_check
      _
    $region35: #{tpu_custom_call.1} parent=1 // pred_check_branch
      %1217 = sbr.rel (0) target = $region37
    $region36: #{tpu_custom_call.1} parent=1 // pred_region
      %s1219 = ssub.s32 512, 512
      %1220 = vsyncadd [#allocation4], %s1219
      %s1221 = sshll.u32 [#allocation3], 4
      %s1222 = int_to_ptr.vmem [resolvable:$true] %s1221
      %1227 = dma.vmem_to_hbm [thread:$0]  %s1222, 512, %s8, [#allocation4], 128, 128, 8
    $region37: #{tpu_custom_call.1} parent=1 // pred_fallthru
      _
    // Predicated region
    $region38: #{tpu_custom_call.1} parent=1 // pred_check
      _
    $region39: #{tpu_custom_call.1} parent=1 // pred_check_branch
      %1229 = sbr.rel (0) target = $region41
    $region40: #{tpu_custom_call.1} parent=1 // pred_region
      %1230 = dma.done [#allocation4], 512
    $region41: #{tpu_custom_call.1} parent=1 // pred_fallthru
      _
    %1231 = vsyncpa [#allocation4], 1

</llo_original>
